<compile_context>
chip_gen: v5e
topology: v5e:2x2
jax: 0.10.0
libtpu: 0.0.40
codegen_flags: <defaults>
</compile_context>

<pallas_src>
import functools

import jax
import jax.numpy as jnp
from jax.experimental import pallas as pl
from jax.experimental.pallas import tpu as pltpu

LANES = 128                      # TPU lane width (last dim of the slab)
_FAST_PATH_ELEMS = 65536         # below this, plain jnp beats a kernel launch
_TARGET_BLOCK_BYTES = 2 << 20    # per input per grid step (2 MiB)
_TARGET_SUB_BYTES = 64 << 10     # per operand inner sub-chunk (vreg pressure)
_NUM_CORE_SPLITS = 2             # v7x megacore; harmless 2-step loop elsewhere


def _round_up(x, m):
    return (x + m - 1) // m * m


def _iso_partial_kernel(x_ref, y_ref, out_ref, *, rows, block_rows, sub_rows,
                        blocks_per_core, any_ragged, unroll):
    # x_ref / y_ref : (block_rows, 128) VMEM tiles of the flattened inputs
    # out_ref       : (1, 8, 128) f32 VMEM block — this core's accumulator,
    #                 resident across the inner ("arbitrary") grid axis.
    c = pl.program_id(0)          # core-split index (parallel)
    i = pl.program_id(1)          # streaming row-block index (arbitrary)

    @pl.when(i == 0)
    def _():
        out_ref[...] = jnp.zeros_like(out_ref)

    g = c * blocks_per_core + i   # logical global row-block index
    base_row = g * block_rows     # first logical row covered by this step

    def fold(masked):
        # Stream the block in ~64 KiB sub-chunks: subtract, (mask,) and fold
        # onto one (8,128) f32 vreg accumulator.  Keeps live ranges bounded
        # instead of materializing a (block_rows,128) diff temporary.
        def body(j, acc):
            start = pl.multiple_of(j * sub_rows, sub_rows)
            xs = x_ref[pl.ds(start, sub_rows), :].astype(jnp.float32)
            ys = y_ref[pl.ds(start, sub_rows), :].astype(jnp.float32)
            d = xs - ys
            if masked:
                rid = jax.lax.broadcasted_iota(jnp.int32, (sub_rows, LANES), 0)
                d = jnp.where(base_row + start + rid < rows, d,
                              jnp.float32(0.0))
            return acc + jnp.sum(d.reshape(sub_rows // 8, 8, LANES), axis=0)

        acc0 = jnp.zeros((8, LANES), jnp.float32)
        acc = jax.lax.fori_loop(0, block_rows // sub_rows, body, acc0,
                                unroll=unroll)
        out_ref[0] = out_ref[0] + acc

    if any_ragged:
        valid = rows - base_row   # rows of this block that really exist
        # Bulk steps take the unmasked path: zero mask cost where it matters.
        @pl.when(valid >= block_rows)
        def _():
            fold(masked=False)

        # Boundary block (partially valid) or phantom step (fully masked;
        # its data is a clamped re-read of the last real block).
        @pl.when(valid < block_rows)
        def _():
            fold(masked=True)
    else:
        fold(masked=False)


@functools.partial(jax.jit, static_argnames=("loss", "min_kernel_elems"))
def iso_loss(output1, output2, loss="l1", min_kernel_elems=_FAST_PATH_ELEMS):
    """Pallas TPU implementation of isoLoss.forward: -(mean(o1 - o2) ** p)."""
    assert output1.shape == output2.shape
    power = 2 if loss == "l2" else 1

    n = output1.size
    x = jnp.ravel(output1)
    y = jnp.ravel(output2)

    rows = n // LANES             # full 128-lane rows handled by the kernel
    tail = n - rows * LANES       # < 128 leftover elements -> wrapper

    # Tiny-input fast path: fixed pallas_call overhead dominates; a fused XLA
    # reduction is faster on every TPU generation.  Also guarantees rows >= 8
    # on the kernel path.
    if n < max(min_kernel_elems, 8 * LANES):
        mean = jnp.mean(x.astype(jnp.float32) - y.astype(jnp.float32))
        return -(mean ** power)

    # ---- dtype-aware tiling (trace-time Python ints) ----------------------
    itemsize = jnp.dtype(output1.dtype).itemsize
    sublane = {4: 8, 2: 16, 1: 32}.get(itemsize, 8)           # packed rows
    sub_target = max(sublane, _TARGET_SUB_BYTES // (LANES * itemsize))
    max_block_rows = max(sub_target, _TARGET_BLOCK_BYTES // (LANES * itemsize))

    splits = _NUM_CORE_SPLITS
    sub_rows = min(sub_target, _round_up(max(rows // splits, 1), sublane))
    block_rows = min(max_block_rows, _round_up(pl.cdiv(rows, splits), sub_rows))
    block_rows = max(sub_rows, (block_rows // sub_rows) * sub_rows)

    nb = pl.cdiv(rows, block_rows)        # total row-blocks
    npc = pl.cdiv(nb, splits)             # grid steps per core slot
    need_clamp = (nb != splits * npc)     # phantom step exists (nb not even)
    any_ragged = need_clamp or (rows % block_rows != 0)
    nsub = block_rows // sub_rows
    unroll = nsub if nsub <= 8 else 4

    # Aligned prefix only — no jnp.pad HBM copies of the full inputs.
    kernel_elems = rows * LANES
    x2 = (x if tail == 0 else x[:kernel_elems]).reshape(rows, LANES)
    y2 = (y if tail == 0 else y[:kernel_elems]).reshape(rows, LANES)

    if need_clamp:
        # Keep the phantom step's DMA inside the array (it is fully masked in
        # the kernel); consecutive identical block indices are cheap.
        def in_map(c, i):
            return (jnp.minimum(c * npc + i, nb - 1), 0)
    else:
        def in_map(c, i):
            return (c * npc + i, 0)

    kernel = functools.partial(
        _iso_partial_kernel,
        rows=rows, block_rows=block_rows, sub_rows=sub_rows,
        blocks_per_core=npc, any_ragged=any_ragged, unroll=unroll)

    partials = pl.pallas_call(
        kernel,
        out_shape=jax.ShapeDtypeStruct((splits, 8, LANES), jnp.float32),
        grid_spec=pltpu.PrefetchScalarGridSpec(
            num_scalar_prefetch=0,
            grid=(splits, npc),
            in_specs=[
                pl.BlockSpec((block_rows, LANES), in_map),
                pl.BlockSpec((block_rows, LANES), in_map),
            ],
            out_specs=pl.BlockSpec((1, 8, LANES), lambda c, i: (c, 0, 0)),
        ),
        compiler_params=pltpu.CompilerParams(
            # Outer core-split axis shards across the 2 TCs on v7x; inner
            # streaming axis is a sequential reduction.
            dimension_semantics=("parallel", "arbitrary"),
        ),
        cost_estimate=pl.CostEstimate(
            flops=2 * n, transcendentals=0,
            bytes_accessed=2 * n * itemsize + splits * 8 * LANES * 4),
    )(x2, y2)

    # ---- finalize in the wrapper (sum of partials + tail + mean/power/neg) -
    total = jnp.sum(partials)
    if tail:
        xt = x[kernel_elems:].astype(jnp.float32)
        yt = y[kernel_elems:].astype(jnp.float32)
        total = total + jnp.sum(xt - yt)
    mean = total * jnp.float32(1.0 / n)
    val = mean * mean if power == 2 else mean
    return -val


if __name__ == "__main__":
    key = jax.random.PRNGKey(0)
    ks = jax.random.split(key, 10)

    def ref(o1, o2, loss):
        p = 2 if loss == "l2" else 1
        return -(jnp.mean(o1 - o2) ** p)

    # Main shapes consistent with the module: batch=2, channels=4, 16x16.
    shape = (2, 4, 16, 16)
    o1 = jax.random.normal(ks[0], shape, dtype=jnp.float32)
    o2 = jax.random.normal(ks[1], shape, dtype=jnp.float32)

    for l in ("l1", "l2"):
        want = ref(o1, o2, l)
        # Pallas kernel path (forced, so the kernel runs even at this size).
        got = jax.block_until_ready(iso_loss(o1, o2, loss=l, min_kernel_elems=0))
        assert jnp.allclose(got, want, atol=1e-5, rtol=1e-5), (l, got, want)
        # Default wrapper (tiny-input jnp fast path) must agree too.
        got_fast = jax.block_until_ready(iso_loss(o1, o2, loss=l))
        assert jnp.allclose(got_fast, want, atol=1e-5, rtol=1e-5), (l, got_fast, want)

    # Edge A: lane-unaligned tiny input -> jnp fast path.
    a1 = jax.random.normal(ks[2], (3, 5, 7), dtype=jnp.float32)
    a2 = jax.random.normal(ks[3], (3, 5, 7), dtype=jnp.float32)
    got = jax.block_until_ready(iso_loss(a1, a2, loss="l1"))
    assert jnp.allclose(got, ref(a1, a2, "l1"), atol=1e-5, rtol=1e-5)

    # Edge B: lane-aligned, ragged row count -> masked boundary block.
    b1 = jax.random.normal(ks[4], (9, 128), dtype=jnp.float32)
    b2 = jax.random.normal(ks[5], (9, 128), dtype=jnp.float32)
    got = jax.block_until_ready(iso_loss(b1, b2, loss="l2", min_kernel_elems=0))
    assert jnp.allclose(got, ref(b1, b2, "l2"), atol=1e-5, rtol=1e-5)

    # Edge C: odd block count -> clamped index map / fully-masked phantom step.
    c1 = jax.random.normal(ks[6], (8, 128), dtype=jnp.float32)
    c2 = jax.random.normal(ks[7], (8, 128), dtype=jnp.float32)
    got = jax.block_until_ready(iso_loss(c1, c2, loss="l1", min_kernel_elems=0))
    assert jnp.allclose(got, ref(c1, c2, "l1"), atol=1e-5, rtol=1e-5)

    # Edge D: lane-unaligned flat vector -> aligned prefix in kernel + wrapper tail.
    d1 = jax.random.normal(ks[8], (4097,), dtype=jnp.float32)
    d2 = jax.random.normal(ks[9], (4097,), dtype=jnp.float32)
    got = jax.block_until_ready(iso_loss(d1, d2, loss="l1", min_kernel_elems=0))
    assert jnp.allclose(got, ref(d1, d2, "l1"), atol=1e-5, rtol=1e-5)

    # Edge E: larger activation that takes the kernel path by default.
    e1 = jax.random.normal(ks[0], (2, 4, 128, 128), dtype=jnp.float32)
    e2 = jax.random.normal(ks[1], (2, 4, 128, 128), dtype=jnp.float32)
    got = jax.block_until_ready(iso_loss(e1, e2, loss="l2"))
    assert jnp.allclose(got, ref(e1, e2, "l2"), atol=1e-5, rtol=1e-5)

    print("KERNEL_OK")
</pallas_src>

<mosaic_0001>
module attributes {stable_mosaic.version = 11 : i64} {
  func.func @_iso_partial_kernel(%arg0: i32, %arg1: i32, %arg2: memref<8x128xf32, #tpu.memory_space<vmem>>, %arg3: memref<8x128xf32, #tpu.memory_space<vmem>>, %arg4: memref<1x8x128xf32, #tpu.memory_space<vmem>>) attributes {dimension_semantics = [#tpu.dimension_semantics<parallel>, #tpu.dimension_semantics<arbitrary>], iteration_bounds = array<i64: 2, 1>, scalar_prefetch = 0 : i64, scratch_operands = 0 : i64, tpu.core_type = #tpu.core_type<tc>, window_params = [{transform_indices = @transform_0, window_bounds = array<i64: 8, 128>}, {transform_indices = @transform_1, window_bounds = array<i64: 8, 128>}, {transform_indices = @transform_2, window_bounds = array<i64: 1, 8, 128>}]} {
    %c0_i32 = arith.constant 0 : i32
    %0 = arith.cmpi eq, %arg1, %c0_i32 : i32
    %1 = arith.extui %0 : i1 to i32
    %c0_i32_0 = arith.constant 0 : i32
    %2 = arith.cmpi ne, %1, %c0_i32_0 : i32
    scf.if %2 {
      %cst_10 = arith.constant 0.000000e+00 : f32
      %20 = vector.broadcast %cst_10 : f32 to vector<1x8x128xf32>
      %c0_11 = arith.constant 0 : index
      %c0_12 = arith.constant 0 : index
      %c0_13 = arith.constant 0 : index
      %21 = vector.load %arg4[%c0_11, %c0_12, %c0_13] : memref<1x8x128xf32, #tpu.memory_space<vmem>>, vector<1x8x128xf32>
      tpu.vector_store %arg4[%c0_11, %c0_12, %c0_13], %20 {strides = array<i32>} : memref<1x8x128xf32, #tpu.memory_space<vmem>>, vector<1x8x128xf32>,
    } else {
    }
    %cst = arith.constant 0.000000e+00 : f32
    %3 = vector.broadcast %cst : f32 to vector<8x128xf32>
    %c0_i32_1 = arith.constant 0 : i32
    %c8_i32 = arith.constant 8 : i32
    %4 = arith.muli %c0_i32_1, %c8_i32 : i32
    %5 = tpu.assume_multiple %4, 8 : i32
    %6 = arith.index_cast %5 : i32 to index
    %c0 = arith.constant 0 : index
    %7 = vector.load %arg2[%6, %c0] : memref<8x128xf32, #tpu.memory_space<vmem>>, vector<8x128xf32>
    %8 = arith.index_cast %5 : i32 to index
    %c0_2 = arith.constant 0 : index
    %9 = vector.load %arg3[%8, %c0_2] : memref<8x128xf32, #tpu.memory_space<vmem>>, vector<8x128xf32>
    %10 = arith.subf %7, %9 : vector<8x128xf32>
    %11 = vector.shape_cast %10 : vector<8x128xf32> to vector<1x8x128xf32>
    %cst_3 = arith.constant dense<0.000000e+00> : vector<8x128xf32>
    %12 = vector.multi_reduction <add>, %11, %cst_3 [0] : vector<1x8x128xf32> to vector<8x128xf32>
    %13 = arith.addf %3, %12 : vector<8x128xf32>
    %c1_i32 = arith.constant 1 : i32
    %c0_4 = arith.constant 0 : index
    %c0_5 = arith.constant 0 : index
    %c0_6 = arith.constant 0 : index
    %14 = vector.load %arg4[%c0_4, %c0_5, %c0_6] : memref<1x8x128xf32, #tpu.memory_space<vmem>>, vector<1x8x128xf32>
    %15 = vector.shape_cast %14 : vector<1x8x128xf32> to vector<8x128xf32>
    %16 = arith.addf %15, %13 : vector<8x128xf32>
    %c0_7 = arith.constant 0 : index
    %c0_8 = arith.constant 0 : index
    %c0_9 = arith.constant 0 : index
    %17 = vector.load %arg4[%c0_7, %c0_8, %c0_9] : memref<1x8x128xf32, #tpu.memory_space<vmem>>, vector<1x8x128xf32>
    %18 = vector.shape_cast %17 : vector<1x8x128xf32> to vector<8x128xf32>
    %19 = vector.shape_cast %16 : vector<8x128xf32> to vector<1x8x128xf32>
    tpu.vector_store %arg4[%c0_7, %c0_8, %c0_9], %19 {strides = array<i32>} : memref<1x8x128xf32, #tpu.memory_space<vmem>>, vector<1x8x128xf32>,
    return
  }
  func.func @transform_0(%arg0: i32, %arg1: i32) -> (i32, i32) {
    %c1_i32 = arith.constant 1 : i32
    %0 = arith.muli %arg0, %c1_i32 : i32
    %1 = arith.addi %0, %arg1 : i32
    %c0_i32 = arith.constant 0 : i32
    %c0_i32_0 = arith.constant 0 : i32
    return %1, %c0_i32 : i32, i32
  }
  func.func @transform_1(%arg0: i32, %arg1: i32) -> (i32, i32) {
    %c1_i32 = arith.constant 1 : i32
    %0 = arith.muli %arg0, %c1_i32 : i32
    %1 = arith.addi %0, %arg1 : i32
    %c0_i32 = arith.constant 0 : i32
    %c0_i32_0 = arith.constant 0 : i32
    return %1, %c0_i32 : i32, i32
  }
  func.func @transform_2(%arg0: i32, %arg1: i32) -> (i32, i32, i32) {
    %c0_i32 = arith.constant 0 : i32
    %c0_i32_0 = arith.constant 0 : i32
    %c0_i32_1 = arith.constant 0 : i32
    return %arg0, %c0_i32, %c0_i32_0 : i32, i32, i32
  }
}

</mosaic_0001>

<llo_original>
// kernel: iso_loss.1
$region0: #{iso_loss.1}
  #allocation0 [shape = 'u32[]', space=smem, size = 0x4, offset = 0x4, fixed_abs, tag = 'smem constant byte address 0x4 - core index']
  #allocation1 [shape = 'u32[72,128]{1,0:T(1,128)}', space=vmem, size = 0x9000, scoped, tag = 'internal scratch']
  %s0 = inlined_call_operand.vmem [shape: f32[16,128], index: 0, kind: input, shape index: {}]
  %s1 = inlined_call_operand.vmem [shape: f32[16,128], index: 1, kind: input, shape index: {}]
  %s2 = inlined_call_operand.vmem [shape: f32[2,8,128], index: 2, kind: output, shape index: {}]
  %s3 = sld [smem:[#allocation0]]
  $region45: #{iso_loss.1} parent=0
    _
  %s5 = ssub.s32 1, %s3
  %s6 = scalar_select 0, %s5, %s3
  loop: start=0, step=1, limit=4
  $region2: #{iso_loss.1} parent=0 // loop_pre_header
    _
  $region3: #{iso_loss.1} parent=0 // loop_header
    %s8 = sphi 0, %s12
    %p9 = scmp.ge.s32.totalorder %s8, 4
    %s15 = sphi 0, %s27
    %s16 = sphi 0, %s23
    %s17 = sphi 0, %s15
    %s18 = sphi 0, %s16
    %s19 = sphi 0, %s17
    %s20 = sphi 0, %s18
    %s32 = sphi 0, %s34
    %s35 = sphi 0, %s32
    %s36 = sphi 0, %s35
    %s52 = sphi 0, %s36
    %s60 = sphi 0, %s62
    %s63 = sphi 0, %s60
    %s64 = sphi 0, %s63
    %s80 = sphi 0, %s64
    %s86 = sphi 0, %s88
    %s89 = sphi 0, %s86
    %s90 = sphi 0, %s89
    %s106 = sphi 0, %s90
  $region4: #{iso_loss.1} parent=0 // loop_header_branch
    %11 = sbr.rel (%p9) target = $region8
  $region5: #{iso_loss.1} parent=0 // loop_body
    %s13 = ssub.s32 %s8, 1
    %s14 = ssub.s32 %s8, 2
    %s21 = sadd.s32 1, %s16
    %p22 = scmp.ge.s32.totalorder %s21, 1
    %s23 = scalar_select %p22, 0, %s21
    %s24 = sadd.s32 1, %s15
    %s25 = scalar_select %p22, %s24, %s15
    %p26 = scmp.ge.s32.totalorder %s25, 2
    %s27 = scalar_select %p26, 0, %s25
    %s28 = sadd.s32 %s15, %s16
    %s29 = sadd.s32 %s27, %s23
    %s30 = ssub.s32 %s28, %s29
    %p31 = scmp.eq.s32.totalorder %s30, 0
    %s33 = sadd.s32 %s32, 1
    %s34 = scalar_select %p31, %s32, %s33
    %p37 = pneg %p31
    %p38 = scmp.eq.s32.totalorder %s8, 1
    %p39 = por %p37, %p38
    %p40 = scmp.ne.s32.totalorder %s32, %s35
    %p41 = scmp.eq.s32.totalorder %s8, 0
    %p42 = por %p40, %p41
    %p43 = scmp.ne.s32.totalorder %s32, %s35
    %p44 = scmp.eq.s32.totalorder %s13, 1
    %p45 = por %p43, %p44
    %p46 = scmp.ne.s32.totalorder %s35, %s36
    %p47 = scmp.eq.s32.totalorder %s13, 0
    %p48 = por %p46, %p47
    %p49 = scmp.ne.s32.totalorder %s35, %s36
    %p50 = scmp.eq.s32.totalorder %s14, 1
    %p51 = por %p49, %p50
    %p53 = scmp.ne.s32.totalorder %s36, %s52
    %p54 = scmp.eq.s32.totalorder %s14, 0
    %p55 = por %p53, %p54
    %s56 = sadd.s32 %s15, %s16
    %s57 = sadd.s32 %s27, %s23
    %s58 = ssub.s32 %s56, %s57
    %p59 = scmp.eq.s32.totalorder %s58, 0
    %s61 = sadd.s32 %s60, 1
    %s62 = scalar_select %p59, %s60, %s61
    %p65 = pneg %p59
    %p66 = scmp.eq.s32.totalorder %s8, 1
    %p67 = por %p65, %p66
    %p68 = scmp.ne.s32.totalorder %s60, %s63
    %p69 = scmp.eq.s32.totalorder %s8, 0
    %p70 = por %p68, %p69
    %p71 = scmp.ne.s32.totalorder %s60, %s63
    %p72 = scmp.eq.s32.totalorder %s13, 1
    %p73 = por %p71, %p72
    %p74 = scmp.ne.s32.totalorder %s63, %s64
    %p75 = scmp.eq.s32.totalorder %s13, 0
    %p76 = por %p74, %p75
    %p77 = scmp.ne.s32.totalorder %s63, %s64
    %p78 = scmp.eq.s32.totalorder %s14, 1
    %p79 = por %p77, %p78
    %p81 = scmp.ne.s32.totalorder %s64, %s80
    %p82 = scmp.eq.s32.totalorder %s14, 0
    %p83 = por %p81, %p82
    %s84 = ssub.s32 %s15, %s27
    %p85 = scmp.eq.s32.totalorder %s84, 0
    %s87 = sadd.s32 %s86, 1
    %s88 = scalar_select %p85, %s86, %s87
    %p91 = pneg %p85
    %p92 = scmp.eq.s32.totalorder %s8, 1
    %p93 = por %p91, %p92
    %p94 = scmp.ne.s32.totalorder %s86, %s89
    %p95 = scmp.eq.s32.totalorder %s8, 0
    %p96 = por %p94, %p95
    %p97 = scmp.ne.s32.totalorder %s86, %s89
    %p98 = scmp.eq.s32.totalorder %s13, 1
    %p99 = por %p97, %p98
    %p100 = scmp.ne.s32.totalorder %s89, %s90
    %p101 = scmp.eq.s32.totalorder %s13, 0
    %p102 = por %p100, %p101
    %p103 = scmp.ne.s32.totalorder %s89, %s90
    %p104 = scmp.eq.s32.totalorder %s14, 1
    %p105 = por %p103, %p104
    %p107 = scmp.ne.s32.totalorder %s90, %s106
    %p108 = scmp.eq.s32.totalorder %s14, 0
    %p109 = por %p107, %p108
    %p110 = scmp.le.s32.totalorder 1, %s8
    %p111 = scmp.lt.s32.totalorder %s8, 3
    %p112 = pnand %p110, %p111
    %p113 = pneg %p112
    // Predicated region
    $region9: #{iso_loss.1} parent=5 // pred_check
      _
    $region10: #{iso_loss.1} parent=5 // pred_check_branch
      %115 = sbr.rel (%p112) target = $region12
    $region11: #{iso_loss.1} parent=5 // pred_region
      %s116 = ssub.s32 %s8, 1
    $region12: #{iso_loss.1} parent=5 // pred_fallthru
      _
    %p117 = scmp.lt.s32.totalorder %s8, 2
    // Predicated region
    $region13: #{iso_loss.1} parent=5 // pred_check
      %p118 = pneg %p117
    $region14: #{iso_loss.1} parent=5 // pred_check_branch
      %120 = sbr.rel (%p118) target = $region16
    $region15: #{iso_loss.1} parent=5 // pred_region
      // Predicated region
      $region17: #{iso_loss.1} parent=15 // pred_check
        %p121 = pneg %p42
      $region18: #{iso_loss.1} parent=15 // pred_check_branch
        %123 = sbr.rel (%p121) target = $region20
      $region19: #{iso_loss.1} parent=15 // pred_region
        %s124 = sadd.s32 %s15, %s16
        %p125 = scmp.lt.s32.totalorder %s124, 1
        %s126 = scalar_select %p125, %s124, 1
        %s127 = smul.addr %s126, 8
        %s128 = scalar_lea.vmem %s0, %s127
        %s129 = sadd.s32 %s15, %s16
      $region20: #{iso_loss.1} parent=15 // pred_fallthru
        _
      // Predicated region
      $region21: #{iso_loss.1} parent=15 // pred_check
        %p130 = pneg %p70
      $region22: #{iso_loss.1} parent=15 // pred_check_branch
        %132 = sbr.rel (%p130) target = $region24
      $region23: #{iso_loss.1} parent=15 // pred_region
        %s133 = sadd.s32 %s15, %s16
        %p134 = scmp.lt.s32.totalorder %s133, 1
        %s135 = scalar_select %p134, %s133, 1
        %s136 = smul.addr %s135, 8
        %s137 = scalar_lea.vmem %s1, %s136
        %s138 = sadd.s32 %s15, %s16
      $region24: #{iso_loss.1} parent=15 // pred_fallthru
        _
    $region16: #{iso_loss.1} parent=5 // pred_fallthru
      _
    %p139 = scmp.le.s32.totalorder 1, %s8
    %p140 = scmp.lt.s32.totalorder %s8, 3
    %p141 = pnand %p139, %p140
    %p142 = pneg %p141
    // Predicated region
    $region25: #{iso_loss.1} parent=5 // pred_check
      _
    $region26: #{iso_loss.1} parent=5 // pred_check_branch
      %144 = sbr.rel (%p141) target = $region28
    $region27: #{iso_loss.1} parent=5 // pred_region
      %s145 = ssub.s32 %s8, 1
      %s146 = sadd.s32 %s17, %s18
      %p147 = scmp.lt.s32.totalorder %s146, 1
      %s148 = scalar_select %p147, %s146, 1
      %s149 = smul.addr %s148, 8
      %s150 = scalar_lea.vmem %s0, %s149
      %p151 = pneg %p48
      %p152 = pneg %p45
      %s153 = sadd.s32 %s17, %s18
      %p154 = scmp.lt.s32.totalorder %s153, 1
      %s155 = scalar_select %p154, %s153, 1
      %s156 = smul.addr %s155, 8
      %s157 = scalar_lea.vmem %s1, %s156
      %p158 = pneg %p76
      %p159 = pneg %p73
      %p160 = pneg %p102
      %p161 = pneg %p99
      %p162 = scmp.lt.s32.totalorder %s17, 1
      %s163 = scalar_select %p162, %s17, 1
      %s164 = smul.addr %s163, 8
      %s165 = scalar_lea.vmem %s2, %s164
      %s166 = sadd.s32 %s17, %s18
      %p167 = scmp.lt.s32.totalorder %s166, 1
      %s168 = scalar_select %p167, %s166, 1
      %s169 = smul.addr %s168, 8
      %s170 = scalar_lea.vmem %s0, %s169
      %s171 = sadd.s32 %s17, %s18
      %s172 = sadd.s32 %s17, %s18
      %p173 = scmp.lt.s32.totalorder %s172, 1
      %s174 = scalar_select %p173, %s172, 1
      %s175 = smul.addr %s174, 8
      %s176 = scalar_lea.vmem %s1, %s175
      %s177 = sadd.s32 %s17, %s18
      %p178 = scmp.lt.s32.totalorder %s17, 1
      %s179 = scalar_select %p178, %s17, 1
      %s180 = smul.addr %s179, 8
      %s181 = scalar_lea.vmem %s2, %s180
      %p182 = scmp.eq.s32.totalorder %s18, 0
      // Predicated region
      $region29: #{iso_loss.1} parent=27 // pred_check
        %p183 = pneg %p182
      $region30: #{iso_loss.1} parent=27 // pred_check_branch
        %185 = sbr.rel (%p183) target = $region32
      $region31: #{iso_loss.1} parent=27 // pred_region
        %186 = vst [vmem:[%s181] sm:$0xff] 0.0
      $region32: #{iso_loss.1} parent=27 // pred_fallthru
        _
      %v187 = vld [vmem:[%s170] sm:$0xff]
      %v188 = vld [vmem:[%s176] sm:$0xff]
      %v189 = vsub.f32 %v187, %v188
      %v190 = vadd.f32 %v189, 0.0
      %v191 = vadd.f32 %v190, 0.0
      %v192 = vld [vmem:[%s181] sm:$0xff]
      %v193 = vadd.f32 %v192, %v191
      %194 = vst [vmem:[%s181] sm:$0xff] %v193
      %p195 = scmp.lt.s32.totalorder %s17, 1
      %s196 = scalar_select %p195, %s17, 1
      %s197 = smul.addr %s196, 8
      %s198 = scalar_lea.vmem %s2, %s197
      // Predicated region
      $region33: #{iso_loss.1} parent=27 // pred_check
        %p199 = pneg %p99
      $region34: #{iso_loss.1} parent=27 // pred_check_branch
        %201 = sbr.rel (%p199) target = $region36
      $region35: #{iso_loss.1} parent=27 // pred_region
        _
      $region36: #{iso_loss.1} parent=27 // pred_fallthru
        _
    $region28: #{iso_loss.1} parent=5 // pred_fallthru
      _
    %p202 = scmp.le.s32.totalorder 2, %s8
    // Predicated region
    $region37: #{iso_loss.1} parent=5 // pred_check
      %p203 = pneg %p202
    $region38: #{iso_loss.1} parent=5 // pred_check_branch
      %205 = sbr.rel (%p203) target = $region40
    $region39: #{iso_loss.1} parent=5 // pred_region
      %s206 = ssub.s32 %s8, 2
      // Predicated region
      $region41: #{iso_loss.1} parent=39 // pred_check
        %p207 = pneg %p105
      $region42: #{iso_loss.1} parent=39 // pred_check_branch
        %209 = sbr.rel (%p207) target = $region44
      $region43: #{iso_loss.1} parent=39 // pred_region
        %p210 = scmp.lt.s32.totalorder %s19, 1
        %s211 = scalar_select %p210, %s19, 1
        %s212 = smul.addr %s211, 8
        %s213 = scalar_lea.vmem %s2, %s212
      $region44: #{iso_loss.1} parent=39 // pred_fallthru
        _
    $region40: #{iso_loss.1} parent=5 // pred_fallthru
      _
  $region6: #{iso_loss.1} parent=0 // loop_footer
    %s12 = sadd.s32 1, %s8
  $region7: #{iso_loss.1} parent=0 // loop_footer_branch
    %7 = sbr.rel target = $region3
  $region8: #{iso_loss.1} parent=0 // loop_exit
    _

</llo_original>
